<compile_context>
chip_gen: v7x
topology: tpu7x:2x2x1
jax: 0.10.0
libtpu: 0.0.40
codegen_flags: <defaults>
</compile_context>

<pallas_src>
import functools

import jax
import jax.numpy as jnp
from jax.experimental import pallas as pl
from jax.experimental.pallas import tpu as pltpu

SMOOTH = 1.0
DICE_WEIGHT = 0.5
BCE_WEIGHT = 0.5
CLASS_WEIGHTS = (1.0, 1.0, 2.0)
LANES = 128


def _partial_sums_kernel(p_ref, t_ref, acc_ref, *,
                         tile_m, chunk_m, rows_total, mask_tail):
    """Grid = (B, C, K).  p_ref/t_ref are (tile_m, 128) slabs of one (b, c) channel.

    acc_ref is a per-(b, c) resident (4, 128) lane-wise accumulator:
      row 0: sum(p*t), row 1: sum(p), row 2: sum(t), row 3: sum(bce).
    It is zeroed at k == 0 and accumulated across the innermost (spatial) grid
    axis; the tiny cross-lane reduce happens in the wrapper.
    """
    k = pl.program_id(2)

    @pl.when(k == 0)
    def _():
        acc_ref[...] = jnp.zeros_like(acc_ref)

    def chunk_sums(start, nrows, carry):
        inter, psum, tsum, bce = carry
        p = p_ref[pl.ds(start, nrows), :].astype(jnp.float32)
        t = t_ref[pl.ds(start, nrows), :].astype(jnp.float32)
        if mask_tail:
            # Only emitted when the last spatial block would read past the true
            # extent; zeroed rows (p=0, t=0) contribute exactly 0 to every sum
            # below (the BCE term is 0 because log(1-0)=0 and the -100 clamp
            # runs before the t* multiply).
            row = k * tile_m + start + jax.lax.broadcasted_iota(jnp.int32, p.shape, 0)
            valid = row < rows_total
            p = jnp.where(valid, p, 0.0)
            t = jnp.where(valid, t, 0.0)

        # --- Dice partials: sublane (VPU) reduce only; cross-lane reduce deferred ---
        inter = inter + jnp.sum(p * t, axis=0, keepdims=True)
        psum = psum + jnp.sum(p, axis=0, keepdims=True)
        tsum = tsum + jnp.sum(t, axis=0, keepdims=True)

        # --- BCE partials (two-log form == torch.nn.BCELoss, handles soft targets) ---
        log_p = jnp.maximum(jnp.log(p), -100.0)
        log_1mp = jnp.maximum(jnp.log(1.0 - p), -100.0)
        bce = bce + jnp.sum(-(t * log_p + (1.0 - t) * log_1mp), axis=0, keepdims=True)
        return inter, psum, tsum, bce

    zeros = jnp.zeros((1, LANES), jnp.float32)
    carry = (zeros, zeros, zeros, zeros)

    num_full = tile_m // chunk_m
    rem = tile_m - num_full * chunk_m

    if num_full > 0:
        def body(i, c):
            start = pl.multiple_of(i * chunk_m, chunk_m)
            return chunk_sums(start, chunk_m, c)
        carry = jax.lax.fori_loop(0, num_full, body, carry)
    if rem > 0:
        carry = chunk_sums(num_full * chunk_m, rem, carry)

    inter, psum, tsum, bce = carry
    acc_ref[...] += jnp.concatenate([inter, psum, tsum, bce], axis=0)


def multilabel_dice_bce_loss(pred, target, *, tile_m=8192, chunk_m=512):
    """pred, target: [B, C=3, D, H, W]; pred already sigmoid'ed.

    Any float dtype (f32 / bf16) is accepted natively — no wrapper upcast, so
    bf16 inputs halve the HBM traffic of this HBM-bound kernel.
    """
    assert pred.shape == target.shape
    B, C, D, H, W = pred.shape
    assert C == len(CLASS_WEIGHTS)
    n = D * H * W
    total_elems = B * C * n

    # Zero-cost reshape of the native layout to lane-dense [B, C, M, 128].
    if n % LANES != 0:
        # TODO(synk): this fallback materializes an HBM copy of both inputs
        # (extra ~2x traffic before the kernel runs); prefer D*H*W % 128 == 0.
        pad = LANES - n % LANES
        pred = jnp.pad(pred.reshape(B, C, n), ((0, 0), (0, 0), (0, pad)))
        target = jnp.pad(target.reshape(B, C, n), ((0, 0), (0, 0), (0, pad)))
        n_pad = n + pad
    else:
        n_pad = n
    M = n_pad // LANES
    p4 = pred.reshape(B, C, M, LANES)
    t4 = target.reshape(B, C, M, LANES)

    # Sublane tile depends on dtype packing: 8 (f32), 16 (bf16), 32 (int8).
    itemsize = jnp.dtype(pred.dtype).itemsize
    sublane = max(8, 32 // itemsize)
    # chunk_m: in-kernel streaming chunk; multiple of 32 covers every dtype.
    chunk_m = max(sublane, (chunk_m // 32) * 32)

    # Row-tile size: tile_m=8192 f32 -> 4 MiB per input block (16 MiB
    # double-buffered for two inputs), amortizing the ~0.35 us/step overhead on
    # all generations while staying inside the raised scoped-VMEM limit.
    if M <= tile_m:
        tile_m = M                      # full-extent block: always legal
        mask_tail = False
    else:
        tile_m = max(chunk_m, (tile_m // chunk_m) * chunk_m)
        mask_tail = (M % tile_m) != 0
    K = pl.cdiv(M, tile_m)

    kernel = functools.partial(_partial_sums_kernel,
                               tile_m=tile_m, chunk_m=chunk_m,
                               rows_total=M, mask_tail=mask_tail)

    cost = pl.CostEstimate(
        flops=12 * total_elems,
        transcendentals=2 * total_elems,
        bytes_accessed=2 * total_elems * itemsize,
    )

    part_shape = jax.ShapeDtypeStruct((B, C, 4, LANES), jnp.float32)
    out_spec = pl.BlockSpec((None, None, 4, LANES), lambda b, c, k: (b, c, 0, 0))
    in_spec = pl.BlockSpec((None, None, tile_m, LANES), lambda b, c, k: (b, c, k, 0))

    parts = pl.pallas_call(
        kernel,
        out_shape=part_shape,
        grid=(B, C, K),
        in_specs=[in_spec, in_spec],
        out_specs=out_spec,
        compiler_params=pltpu.CompilerParams(
            dimension_semantics=("parallel", "parallel", "arbitrary"),
            vmem_limit_bytes=48 * 1024 * 1024),
        cost_estimate=cost,
    )(p4, t4)

    # Tiny finalize in plain JAX: single cross-lane/batch reduce + dice/BCE combine.
    inter = jnp.sum(parts[:, :, 0, :], axis=(0, 2))     # (C,)
    psum = jnp.sum(parts[:, :, 1, :], axis=(0, 2))      # (C,)
    tsum = jnp.sum(parts[:, :, 2, :], axis=(0, 2))      # (C,)
    bce_total = jnp.sum(parts[:, :, 3, :])

    w = jnp.asarray(CLASS_WEIGHTS, dtype=jnp.float32)
    dice = (2.0 * inter + SMOOTH) / (psum + tsum + SMOOTH)
    dice_loss = jnp.sum(w * (1.0 - dice)) / jnp.sum(w)
    bce_loss = bce_total / jnp.float32(total_elems)
    return DICE_WEIGHT * dice_loss + BCE_WEIGHT * bce_loss


def _reference_loss(pred, target):
    """Pure-JAX reference mirroring the PyTorch module."""
    pred = pred.astype(jnp.float32)
    target = target.astype(jnp.float32)
    w = jnp.asarray(CLASS_WEIGHTS, dtype=jnp.float32)
    total = 0.0
    for i in range(pred.shape[1]):
        p = pred[:, i].reshape(-1)
        t = target[:, i].reshape(-1)
        inter = jnp.sum(p * t)
        dice = (2.0 * inter + SMOOTH) / (jnp.sum(p) + jnp.sum(t) + SMOOTH)
        total = total + w[i] * (1.0 - dice)
    dice_loss = total / jnp.sum(w)
    log_p = jnp.maximum(jnp.log(pred), -100.0)
    log_1mp = jnp.maximum(jnp.log(1.0 - pred), -100.0)
    bce = jnp.mean(-(target * log_p + (1.0 - target) * log_1mp))
    return DICE_WEIGHT * dice_loss + BCE_WEIGHT * bce


if __name__ == "__main__":
    key = jax.random.PRNGKey(0)
    k1, k2 = jax.random.split(key)
    B, C, D, H, W = 2, 3, 4, 16, 16
    # pred is "after sigmoid" -> values in (0, 1)
    pred = jax.nn.sigmoid(jax.random.normal(k1, (B, C, D, H, W), jnp.float32))
    target = (jax.random.uniform(k2, (B, C, D, H, W)) > 0.5).astype(jnp.float32)

    loss_fn = jax.jit(multilabel_dice_bce_loss)
    loss = jax.block_until_ready(loss_fn(pred, target))
    ref = jax.block_until_ready(_reference_loss(pred, target))

    assert jnp.allclose(loss, ref, rtol=1e-5, atol=1e-5), (loss, ref)
    print("KERNEL_OK")
</pallas_src>

<mosaic_0001>
module attributes {stable_mosaic.version = 11 : i64} {
  func.func @_partial_sums_kernel(%arg0: i32, %arg1: i32, %arg2: i32, %arg3: memref<1x1x8x128xf32, #tpu.memory_space<vmem>>, %arg4: memref<1x1x8x128xf32, #tpu.memory_space<vmem>>, %arg5: memref<1x1x4x128xf32, #tpu.memory_space<vmem>>) attributes {dimension_semantics = [#tpu.dimension_semantics<parallel>, #tpu.dimension_semantics<parallel>, #tpu.dimension_semantics<arbitrary>], iteration_bounds = array<i64: 2, 3, 1>, scalar_prefetch = 0 : i64, scratch_operands = 0 : i64, tpu.core_type = #tpu.core_type<tc>, window_params = [{transform_indices = @transform_0, window_bounds = array<i64: 1, 1, 8, 128>}, {transform_indices = @transform_1, window_bounds = array<i64: 1, 1, 8, 128>}, {transform_indices = @transform_2, window_bounds = array<i64: 1, 1, 4, 128>}]} {
    %c0_i32 = arith.constant 0 : i32
    %0 = arith.cmpi eq, %arg2, %c0_i32 : i32
    %1 = arith.extui %0 : i1 to i32
    %c0_i32_0 = arith.constant 0 : i32
    %2 = arith.cmpi ne, %1, %c0_i32_0 : i32
    scf.if %2 {
      %cst_25 = arith.constant 0.000000e+00 : f32
      %43 = vector.broadcast %cst_25 : f32 to vector<4x128xf32>
      %c0_26 = arith.constant 0 : index
      %c0_27 = arith.constant 0 : index
      %c0_28 = arith.constant 0 : index
      %c0_29 = arith.constant 0 : index
      %44 = vector.load %arg5[%c0_26, %c0_27, %c0_28, %c0_29] : memref<1x1x4x128xf32, #tpu.memory_space<vmem>>, vector<1x1x4x128xf32>
      %45 = vector.shape_cast %44 : vector<1x1x4x128xf32> to vector<4x128xf32>
      %46 = vector.shape_cast %43 : vector<4x128xf32> to vector<1x1x4x128xf32>
      tpu.vector_store %arg5[%c0_26, %c0_27, %c0_28, %c0_29], %46 {strides = array<i32>} : memref<1x1x4x128xf32, #tpu.memory_space<vmem>>, vector<1x1x4x128xf32>,
    } else {
    }
    %cst = arith.constant 0.000000e+00 : f32
    %3 = vector.broadcast %cst : f32 to vector<1x128xf32>
    %c0 = arith.constant 0 : index
    %c0_1 = arith.constant 0 : index
    %c0_2 = arith.constant 0 : index
    %c0_3 = arith.constant 0 : index
    %4 = vector.load %arg3[%c0, %c0_1, %c0_2, %c0_3] : memref<1x1x8x128xf32, #tpu.memory_space<vmem>>, vector<1x1x8x128xf32>
    %5 = vector.shape_cast %4 : vector<1x1x8x128xf32> to vector<8x128xf32>
    %c0_4 = arith.constant 0 : index
    %c0_5 = arith.constant 0 : index
    %c0_6 = arith.constant 0 : index
    %c0_7 = arith.constant 0 : index
    %6 = vector.load %arg4[%c0_4, %c0_5, %c0_6, %c0_7] : memref<1x1x8x128xf32, #tpu.memory_space<vmem>>, vector<1x1x8x128xf32>
    %7 = vector.shape_cast %6 : vector<1x1x8x128xf32> to vector<8x128xf32>
    %8 = arith.mulf %5, %7 : vector<8x128xf32>
    %cst_8 = arith.constant dense<0.000000e+00> : vector<128xf32>
    %9 = vector.multi_reduction <add>, %8, %cst_8 [0] : vector<8x128xf32> to vector<128xf32>
    %10 = vector.shape_cast %9 : vector<128xf32> to vector<1x128xf32>
    %11 = arith.addf %3, %10 : vector<1x128xf32>
    %cst_9 = arith.constant dense<0.000000e+00> : vector<128xf32>
    %12 = vector.multi_reduction <add>, %5, %cst_9 [0] : vector<8x128xf32> to vector<128xf32>
    %13 = vector.shape_cast %12 : vector<128xf32> to vector<1x128xf32>
    %14 = arith.addf %3, %13 : vector<1x128xf32>
    %cst_10 = arith.constant dense<0.000000e+00> : vector<128xf32>
    %15 = vector.multi_reduction <add>, %7, %cst_10 [0] : vector<8x128xf32> to vector<128xf32>
    %16 = vector.shape_cast %15 : vector<128xf32> to vector<1x128xf32>
    %17 = arith.addf %3, %16 : vector<1x128xf32>
    %18 = math.log %5 : vector<8x128xf32>
    %cst_11 = arith.constant -1.000000e+02 : f32
    %19 = vector.broadcast %cst_11 : f32 to vector<8x128xf32>
    %20 = arith.maximumf %18, %19 : vector<8x128xf32>
    %cst_12 = arith.constant 1.000000e+00 : f32
    %21 = vector.broadcast %cst_12 : f32 to vector<8x128xf32>
    %22 = arith.subf %21, %5 : vector<8x128xf32>
    %23 = math.log %22 : vector<8x128xf32>
    %cst_13 = arith.constant -1.000000e+02 : f32
    %24 = vector.broadcast %cst_13 : f32 to vector<8x128xf32>
    %25 = arith.maximumf %23, %24 : vector<8x128xf32>
    %26 = arith.mulf %7, %20 : vector<8x128xf32>
    %cst_14 = arith.constant 1.000000e+00 : f32
    %27 = vector.broadcast %cst_14 : f32 to vector<8x128xf32>
    %28 = arith.subf %27, %7 : vector<8x128xf32>
    %29 = arith.mulf %28, %25 : vector<8x128xf32>
    %30 = arith.addf %26, %29 : vector<8x128xf32>
    %cst_15 = arith.constant 0.000000e+00 : f32
    %31 = vector.broadcast %cst_15 : f32 to vector<8x128xf32>
    %32 = arith.subf %31, %30 : vector<8x128xf32>
    %cst_16 = arith.constant dense<0.000000e+00> : vector<128xf32>
    %33 = vector.multi_reduction <add>, %32, %cst_16 [0] : vector<8x128xf32> to vector<128xf32>
    %34 = vector.shape_cast %33 : vector<128xf32> to vector<1x128xf32>
    %35 = arith.addf %3, %34 : vector<1x128xf32>
    %c0_17 = arith.constant 0 : index
    %c0_18 = arith.constant 0 : index
    %c0_19 = arith.constant 0 : index
    %c0_20 = arith.constant 0 : index
    %36 = vector.load %arg5[%c0_17, %c0_18, %c0_19, %c0_20] : memref<1x1x4x128xf32, #tpu.memory_space<vmem>>, vector<1x1x4x128xf32>
    %37 = vector.shape_cast %36 : vector<1x1x4x128xf32> to vector<4x128xf32>
    %38 = tpu.concatenate %11, %14, %17, %35 in 0 : vector<1x128xf32>, vector<1x128xf32>, vector<1x128xf32>, vector<1x128xf32> -> vector<4x128xf32>
    %39 = arith.addf %37, %38 : vector<4x128xf32>
    %c0_21 = arith.constant 0 : index
    %c0_22 = arith.constant 0 : index
    %c0_23 = arith.constant 0 : index
    %c0_24 = arith.constant 0 : index
    %40 = vector.load %arg5[%c0_21, %c0_22, %c0_23, %c0_24] : memref<1x1x4x128xf32, #tpu.memory_space<vmem>>, vector<1x1x4x128xf32>
    %41 = vector.shape_cast %40 : vector<1x1x4x128xf32> to vector<4x128xf32>
    %42 = vector.shape_cast %39 : vector<4x128xf32> to vector<1x1x4x128xf32>
    tpu.vector_store %arg5[%c0_21, %c0_22, %c0_23, %c0_24], %42 {strides = array<i32>} : memref<1x1x4x128xf32, #tpu.memory_space<vmem>>, vector<1x1x4x128xf32>,
    return
  }
  func.func @transform_0(%arg0: i32, %arg1: i32, %arg2: i32) -> (i32, i32, i32, i32) {
    %c0_i32 = arith.constant 0 : i32
    %c0_i32_0 = arith.constant 0 : i32
    return %arg0, %arg1, %arg2, %c0_i32 : i32, i32, i32, i32
  }
  func.func @transform_1(%arg0: i32, %arg1: i32, %arg2: i32) -> (i32, i32, i32, i32) {
    %c0_i32 = arith.constant 0 : i32
    %c0_i32_0 = arith.constant 0 : i32
    return %arg0, %arg1, %arg2, %c0_i32 : i32, i32, i32, i32
  }
  func.func @transform_2(%arg0: i32, %arg1: i32, %arg2: i32) -> (i32, i32, i32, i32) {
    %c0_i32 = arith.constant 0 : i32
    %c0_i32_0 = arith.constant 0 : i32
    %c0_i32_1 = arith.constant 0 : i32
    return %arg0, %arg1, %c0_i32, %c0_i32_0 : i32, i32, i32, i32
  }
}

</mosaic_0001>

<llo_original>
// kernel: multilabel_dice_bce_loss.1
$region0: #{multilabel_dice_bce_loss.1}
  #allocation0 [shape = 'u32[]', space=smem, size = 0x4, offset = 0x4, fixed_abs, tag = 'smem constant byte address 0x4 - core index']
  #allocation1 [shape = 'u32[144,128]{1,0:T(1,128)}', space=vmem, size = 0x12000, scoped, tag = 'internal scratch']
  %s0 = inlined_call_operand.vmem [shape: f32[2,3,8,128], index: 0, kind: input, shape index: {}]
  %s1 = inlined_call_operand.vmem [shape: f32[2,3,8,128], index: 1, kind: input, shape index: {}]
  %s2 = inlined_call_operand.vmem [shape: f32[2,3,4,128], index: 2, kind: output, shape index: {}]
  %s3 = sld [smem:[#allocation0]]
  $region45: #{multilabel_dice_bce_loss.1} parent=0
    _
  %s5 = ssub.s32 1, %s3
  %s6 = scalar_select 0, %s5, %s3
  loop: start=0, step=1, limit=8
  $region2: #{multilabel_dice_bce_loss.1} parent=0 // loop_pre_header
    _
  $region3: #{multilabel_dice_bce_loss.1} parent=0 // loop_header
    %s8 = sphi 0, %s12
    %p9 = scmp.ge.s32.totalorder %s8, 8
    %s15 = sphi 0, %s34
    %s16 = sphi 0, %s30
    %s17 = sphi 0, %s26
    %s18 = sphi 0, %s15
    %s19 = sphi 0, %s16
    %s20 = sphi 0, %s17
    %s21 = sphi 0, %s18
    %s22 = sphi 0, %s19
    %s23 = sphi 0, %s20
    %s41 = sphi 0, %s43
    %s44 = sphi 0, %s41
    %s45 = sphi 0, %s44
    %s61 = sphi 0, %s45
    %s71 = sphi 0, %s73
    %s74 = sphi 0, %s71
    %s75 = sphi 0, %s74
    %s91 = sphi 0, %s75
    %s99 = sphi 0, %s101
    %s102 = sphi 0, %s99
    %s103 = sphi 0, %s102
    %s119 = sphi 0, %s103
  $region4: #{multilabel_dice_bce_loss.1} parent=0 // loop_header_branch
    %11 = sbr.rel (%p9) target = $region8
  $region5: #{multilabel_dice_bce_loss.1} parent=0 // loop_body
    %s13 = ssub.s32 %s8, 1
    %s14 = ssub.s32 %s8, 2
    %s24 = sadd.s32 1, %s17
    %p25 = scmp.ge.s32.totalorder %s24, 1
    %s26 = scalar_select %p25, 0, %s24
    %s27 = sadd.s32 1, %s16
    %s28 = scalar_select %p25, %s27, %s16
    %p29 = scmp.ge.s32.totalorder %s28, 3
    %s30 = scalar_select %p29, 0, %s28
    %s31 = sadd.s32 1, %s15
    %s32 = scalar_select %p29, %s31, %s15
    %p33 = scmp.ge.s32.totalorder %s32, 2
    %s34 = scalar_select %p33, 0, %s32
    %s35 = ssub.s32 %s15, %s34
    %s36 = ssub.s32 %s16, %s30
    %s37 = sor.u32 %s35, %s36
    %s38 = ssub.s32 %s17, %s26
    %s39 = sor.u32 %s37, %s38
    %p40 = scmp.eq.s32.totalorder %s39, 0
    %s42 = sadd.s32 %s41, 1
    %s43 = scalar_select %p40, %s41, %s42
    %p46 = pneg %p40
    %p47 = scmp.eq.s32.totalorder %s8, 5
    %p48 = por %p46, %p47
    %p49 = scmp.ne.s32.totalorder %s41, %s44
    %p50 = scmp.eq.s32.totalorder %s8, 0
    %p51 = por %p49, %p50
    %p52 = scmp.ne.s32.totalorder %s41, %s44
    %p53 = scmp.eq.s32.totalorder %s13, 5
    %p54 = por %p52, %p53
    %p55 = scmp.ne.s32.totalorder %s44, %s45
    %p56 = scmp.eq.s32.totalorder %s13, 0
    %p57 = por %p55, %p56
    %p58 = scmp.ne.s32.totalorder %s44, %s45
    %p59 = scmp.eq.s32.totalorder %s14, 5
    %p60 = por %p58, %p59
    %p62 = scmp.ne.s32.totalorder %s45, %s61
    %p63 = scmp.eq.s32.totalorder %s14, 0
    %p64 = por %p62, %p63
    %s65 = ssub.s32 %s15, %s34
    %s66 = ssub.s32 %s16, %s30
    %s67 = sor.u32 %s65, %s66
    %s68 = ssub.s32 %s17, %s26
    %s69 = sor.u32 %s67, %s68
    %p70 = scmp.eq.s32.totalorder %s69, 0
    %s72 = sadd.s32 %s71, 1
    %s73 = scalar_select %p70, %s71, %s72
    %p76 = pneg %p70
    %p77 = scmp.eq.s32.totalorder %s8, 5
    %p78 = por %p76, %p77
    %p79 = scmp.ne.s32.totalorder %s71, %s74
    %p80 = scmp.eq.s32.totalorder %s8, 0
    %p81 = por %p79, %p80
    %p82 = scmp.ne.s32.totalorder %s71, %s74
    %p83 = scmp.eq.s32.totalorder %s13, 5
    %p84 = por %p82, %p83
    %p85 = scmp.ne.s32.totalorder %s74, %s75
    %p86 = scmp.eq.s32.totalorder %s13, 0
    %p87 = por %p85, %p86
    %p88 = scmp.ne.s32.totalorder %s74, %s75
    %p89 = scmp.eq.s32.totalorder %s14, 5
    %p90 = por %p88, %p89
    %p92 = scmp.ne.s32.totalorder %s75, %s91
    %p93 = scmp.eq.s32.totalorder %s14, 0
    %p94 = por %p92, %p93
    %s95 = ssub.s32 %s15, %s34
    %s96 = ssub.s32 %s16, %s30
    %s97 = sor.u32 %s95, %s96
    %p98 = scmp.eq.s32.totalorder %s97, 0
    %s100 = sadd.s32 %s99, 1
    %s101 = scalar_select %p98, %s99, %s100
    %p104 = pneg %p98
    %p105 = scmp.eq.s32.totalorder %s8, 5
    %p106 = por %p104, %p105
    %p107 = scmp.ne.s32.totalorder %s99, %s102
    %p108 = scmp.eq.s32.totalorder %s8, 0
    %p109 = por %p107, %p108
    %p110 = scmp.ne.s32.totalorder %s99, %s102
    %p111 = scmp.eq.s32.totalorder %s13, 5
    %p112 = por %p110, %p111
    %p113 = scmp.ne.s32.totalorder %s102, %s103
    %p114 = scmp.eq.s32.totalorder %s13, 0
    %p115 = por %p113, %p114
    %p116 = scmp.ne.s32.totalorder %s102, %s103
    %p117 = scmp.eq.s32.totalorder %s14, 5
    %p118 = por %p116, %p117
    %p120 = scmp.ne.s32.totalorder %s103, %s119
    %p121 = scmp.eq.s32.totalorder %s14, 0
    %p122 = por %p120, %p121
    %p123 = scmp.le.s32.totalorder 1, %s8
    %p124 = scmp.lt.s32.totalorder %s8, 7
    %p125 = pnand %p123, %p124
    %p126 = pneg %p125
    // Predicated region
    $region9: #{multilabel_dice_bce_loss.1} parent=5 // pred_check
      _
    $region10: #{multilabel_dice_bce_loss.1} parent=5 // pred_check_branch
      %128 = sbr.rel (%p125) target = $region12
    $region11: #{multilabel_dice_bce_loss.1} parent=5 // pred_region
      %s129 = ssub.s32 %s8, 1
    $region12: #{multilabel_dice_bce_loss.1} parent=5 // pred_fallthru
      _
    %p130 = scmp.lt.s32.totalorder %s8, 6
    // Predicated region
    $region13: #{multilabel_dice_bce_loss.1} parent=5 // pred_check
      %p131 = pneg %p130
    $region14: #{multilabel_dice_bce_loss.1} parent=5 // pred_check_branch
      %133 = sbr.rel (%p131) target = $region16
    $region15: #{multilabel_dice_bce_loss.1} parent=5 // pred_region
      // Predicated region
      $region17: #{multilabel_dice_bce_loss.1} parent=15 // pred_check
        %p134 = pneg %p51
      $region18: #{multilabel_dice_bce_loss.1} parent=15 // pred_check_branch
        %136 = sbr.rel (%p134) target = $region20
      $region19: #{multilabel_dice_bce_loss.1} parent=15 // pred_region
        %p137 = scmp.lt.s32.totalorder %s15, 1
        %s138 = scalar_select %p137, %s15, 1
        %p139 = scmp.lt.s32.totalorder %s16, 2
        %s140 = scalar_select %p139, %s16, 2
        %p141 = scmp.lt.s32.totalorder %s17, 0
        %s142 = scalar_select %p141, %s17, 0
        %s143 = sadd.s32 %s142, %s140
        %s144 = smul.addr %s138, 3
        %s145 = sadd.s32 %s143, %s144
        %s146 = smul.addr %s145, 8
        %s147 = scalar_lea.vmem %s0, %s146
      $region20: #{multilabel_dice_bce_loss.1} parent=15 // pred_fallthru
        _
      // Predicated region
      $region21: #{multilabel_dice_bce_loss.1} parent=15 // pred_check
        %p148 = pneg %p81
      $region22: #{multilabel_dice_bce_loss.1} parent=15 // pred_check_branch
        %150 = sbr.rel (%p148) target = $region24
      $region23: #{multilabel_dice_bce_loss.1} parent=15 // pred_region
        %p151 = scmp.lt.s32.totalorder %s15, 1
        %s152 = scalar_select %p151, %s15, 1
        %p153 = scmp.lt.s32.totalorder %s16, 2
        %s154 = scalar_select %p153, %s16, 2
        %p155 = scmp.lt.s32.totalorder %s17, 0
        %s156 = scalar_select %p155, %s17, 0
        %s157 = sadd.s32 %s156, %s154
        %s158 = smul.addr %s152, 3
        %s159 = sadd.s32 %s157, %s158
        %s160 = smul.addr %s159, 8
        %s161 = scalar_lea.vmem %s1, %s160
      $region24: #{multilabel_dice_bce_loss.1} parent=15 // pred_fallthru
        _
    $region16: #{multilabel_dice_bce_loss.1} parent=5 // pred_fallthru
      _
    %p162 = scmp.le.s32.totalorder 1, %s8
    %p163 = scmp.lt.s32.totalorder %s8, 7
    %p164 = pnand %p162, %p163
    %p165 = pneg %p164
    // Predicated region
    $region25: #{multilabel_dice_bce_loss.1} parent=5 // pred_check
      _
    $region26: #{multilabel_dice_bce_loss.1} parent=5 // pred_check_branch
      %167 = sbr.rel (%p164) target = $region28
    $region27: #{multilabel_dice_bce_loss.1} parent=5 // pred_region
      %s168 = ssub.s32 %s8, 1
      %p169 = scmp.lt.s32.totalorder %s18, 1
      %s170 = scalar_select %p169, %s18, 1
      %p171 = scmp.lt.s32.totalorder %s19, 2
      %s172 = scalar_select %p171, %s19, 2
      %p173 = scmp.lt.s32.totalorder %s20, 0
      %s174 = scalar_select %p173, %s20, 0
      %s175 = sadd.s32 %s174, %s172
      %s176 = smul.addr %s170, 3
      %s177 = sadd.s32 %s175, %s176
      %s178 = smul.addr %s177, 8
      %s179 = scalar_lea.vmem %s0, %s178
      %p180 = pneg %p57
      %p181 = pneg %p54
      %p182 = scmp.lt.s32.totalorder %s18, 1
      %s183 = scalar_select %p182, %s18, 1
      %p184 = scmp.lt.s32.totalorder %s19, 2
      %s185 = scalar_select %p184, %s19, 2
      %p186 = scmp.lt.s32.totalorder %s20, 0
      %s187 = scalar_select %p186, %s20, 0
      %s188 = sadd.s32 %s187, %s185
      %s189 = smul.addr %s183, 3
      %s190 = sadd.s32 %s188, %s189
      %s191 = smul.addr %s190, 8
      %s192 = scalar_lea.vmem %s1, %s191
      %p193 = pneg %p87
      %p194 = pneg %p84
      %p195 = pneg %p115
      %p196 = pneg %p112
      %p197 = scmp.lt.s32.totalorder %s18, 1
      %s198 = scalar_select %p197, %s18, 1
      %p199 = scmp.lt.s32.totalorder %s19, 2
      %s200 = scalar_select %p199, %s19, 2
      %s201 = smul.addr %s198, 3
      %s202 = sadd.s32 %s200, %s201
      %s203 = smul.addr %s202, 4
      %s204 = scalar_lea.vmem %s2, %s203
      %p205 = scmp.lt.s32.totalorder %s18, 1
      %s206 = scalar_select %p205, %s18, 1
      %p207 = scmp.lt.s32.totalorder %s19, 2
      %s208 = scalar_select %p207, %s19, 2
      %p209 = scmp.lt.s32.totalorder %s20, 0
      %s210 = scalar_select %p209, %s20, 0
      %s211 = sadd.s32 %s210, %s208
      %s212 = smul.addr %s206, 3
      %s213 = sadd.s32 %s211, %s212
      %s214 = smul.addr %s213, 8
      %s215 = scalar_lea.vmem %s0, %s214
      %p216 = scmp.lt.s32.totalorder %s18, 1
      %s217 = scalar_select %p216, %s18, 1
      %p218 = scmp.lt.s32.totalorder %s19, 2
      %s219 = scalar_select %p218, %s19, 2
      %p220 = scmp.lt.s32.totalorder %s20, 0
      %s221 = scalar_select %p220, %s20, 0
      %s222 = sadd.s32 %s221, %s219
      %s223 = smul.addr %s217, 3
      %s224 = sadd.s32 %s222, %s223
      %s225 = smul.addr %s224, 8
      %s226 = scalar_lea.vmem %s1, %s225
      %p227 = scmp.lt.s32.totalorder %s18, 1
      %s228 = scalar_select %p227, %s18, 1
      %p229 = scmp.lt.s32.totalorder %s19, 2
      %s230 = scalar_select %p229, %s19, 2
      %s231 = smul.addr %s228, 3
      %s232 = sadd.s32 %s230, %s231
      %s233 = smul.addr %s232, 4
      %s234 = scalar_lea.vmem %s2, %s233
      %p235 = scmp.eq.s32.totalorder %s20, 0
      // Predicated region
      $region29: #{multilabel_dice_bce_loss.1} parent=27 // pred_check
        %p236 = pneg %p235
      $region30: #{multilabel_dice_bce_loss.1} parent=27 // pred_check_branch
        %238 = sbr.rel (%p236) target = $region32
      $region31: #{multilabel_dice_bce_loss.1} parent=27 // pred_region
        %239 = vst [vmem:[%s234] sm:$0xf] 0.0
      $region32: #{multilabel_dice_bce_loss.1} parent=27 // pred_fallthru
        _
      %v240 = vld [vmem:[%s215] sm:$0xff]
      %v241 = vld [vmem:[%s226] sm:$0xff]
      %v242 = vmul.f32 %v240, %v241
      %v243 = vrot.slane %v242, 4
      %v244 = vadd.f32 %v242, %v243
      %v245 = vrot.slane %v244, 2
      %v246 = vadd.f32 %v244, %v245
      %v247 = vrot.slane %v246, 1
      %v248 = vadd.f32 %v246, %v247
      %v249 = vadd.f32 %v248, 0.0
      %v250 = vrot.slane %v240, 4
      %v251 = vadd.f32 %v240, %v250
      %v252 = vrot.slane %v251, 2
      %v253 = vadd.f32 %v251, %v252
      %v254 = vrot.slane %v253, 1
      %v255 = vadd.f32 %v253, %v254
      %v256 = vadd.f32 %v255, 0.0
      %v257 = vrot.slane %v241, 4
      %v258 = vadd.f32 %v241, %v257
      %v259 = vrot.slane %v258, 2
      %v260 = vadd.f32 %v258, %v259
      %v261 = vrot.slane %v260, 1
      %v262 = vadd.f32 %v260, %v261
      %v263 = vadd.f32 %v262, 0.0
      %v264 = vlog2.pop %v240
      %v265 = vmul.f32 %v264, 0.6931472
      %v266 = vmax.f32 %v265, -100.0
      %v267 = vsub.f32 1.0, %v240
      %v268 = vlog2.pop %v267
      %v269 = vmul.f32 %v268, 0.6931472
      %v270 = vmax.f32 %v269, -100.0
      %v271 = vmul.f32 %v241, %v266
      %v272 = vsub.f32 1.0, %v241
      %v273 = vmul.f32 %v272, %v270
      %v274 = vadd.f32 %v271, %v273
      %v275 = vsub.f32 0.0, %v274
      %v276 = vrot.slane %v275, 4
      %v277 = vadd.f32 %v275, %v276
      %v278 = vrot.slane %v277, 2
      %v279 = vadd.f32 %v277, %v278
      %v280 = vrot.slane %v279, 1
      %v281 = vadd.f32 %v279, %v280
      %v282 = vadd.f32 %v281, 0.0
      %v283 = vld [vmem:[%s234] sm:$0xf]
      %vm284 = vcmask 1040384
      %v285 = vsel %vm284, %v249, %v256
      %vm286 = vcmask 1041408
      %v287 = vsel %vm286, %v285, %v263
      %vm288 = vcmask 1042432
      %v289 = vsel %vm288, %v287, %v282
      %v290 = vadd.f32 %v283, %v289
      %291 = vst [vmem:[%s234] sm:$0xf] %v290
      %p292 = scmp.lt.s32.totalorder %s18, 1
      %s293 = scalar_select %p292, %s18, 1
      %p294 = scmp.lt.s32.totalorder %s19, 2
      %s295 = scalar_select %p294, %s19, 2
      %s296 = smul.addr %s293, 3
      %s297 = sadd.s32 %s295, %s296
      %s298 = smul.addr %s297, 4
      %s299 = scalar_lea.vmem %s2, %s298
      // Predicated region
      $region33: #{multilabel_dice_bce_loss.1} parent=27 // pred_check
        %p300 = pneg %p112
      $region34: #{multilabel_dice_bce_loss.1} parent=27 // pred_check_branch
        %302 = sbr.rel (%p300) target = $region36
      $region35: #{multilabel_dice_bce_loss.1} parent=27 // pred_region
        _
      $region36: #{multilabel_dice_bce_loss.1} parent=27 // pred_fallthru
        _
    $region28: #{multilabel_dice_bce_loss.1} parent=5 // pred_fallthru
      _
    %p303 = scmp.le.s32.totalorder 2, %s8
    // Predicated region
    $region37: #{multilabel_dice_bce_loss.1} parent=5 // pred_check
      %p304 = pneg %p303
    $region38: #{multilabel_dice_bce_loss.1} parent=5 // pred_check_branch
      %306 = sbr.rel (%p304) target = $region40
    $region39: #{multilabel_dice_bce_loss.1} parent=5 // pred_region
      %s307 = ssub.s32 %s8, 2
      // Predicated region
      $region41: #{multilabel_dice_bce_loss.1} parent=39 // pred_check
        %p308 = pneg %p118
      $region42: #{multilabel_dice_bce_loss.1} parent=39 // pred_check_branch
        %310 = sbr.rel (%p308) target = $region44
      $region43: #{multilabel_dice_bce_loss.1} parent=39 // pred_region
        %p311 = scmp.lt.s32.totalorder %s21, 1
        %s312 = scalar_select %p311, %s21, 1
        %p313 = scmp.lt.s32.totalorder %s22, 2
        %s314 = scalar_select %p313, %s22, 2
        %s315 = smul.addr %s312, 3
        %s316 = sadd.s32 %s314, %s315
        %s317 = smul.addr %s316, 4
        %s318 = scalar_lea.vmem %s2, %s317
      $region44: #{multilabel_dice_bce_loss.1} parent=39 // pred_fallthru
        _
    $region40: #{multilabel_dice_bce_loss.1} parent=5 // pred_fallthru
      _
  $region6: #{multilabel_dice_bce_loss.1} parent=0 // loop_footer
    %s12 = sadd.s32 1, %s8
  $region7: #{multilabel_dice_bce_loss.1} parent=0 // loop_footer_branch
    %7 = sbr.rel target = $region3
  $region8: #{multilabel_dice_bce_loss.1} parent=0 // loop_exit
    _

</llo_original>
